<compile_context>
chip_gen: v7x
topology: tpu7x:2x2x1
jax: 0.10.0
libtpu: 0.0.40
codegen_flags: <defaults>
</compile_context>

<pallas_src>
import jax
import jax.numpy as jnp
from jax import lax
from jax.experimental import pallas as pl
from jax.experimental.pallas import tpu as pltpu


def _round_up(x, m):
    return ((x + m - 1) // m) * m


# -----------------------------------------------------------------------------
# Pallas kernel: one T-chunk of the GRU recurrence + per-chunk FC head.
#   gi_ref   : (TC, Bp, 3H)  precomputed input projections
#              (b_ih and the r/z parts of b_hh already folded in)
#   whh_ref  : (H, 3H)       fused hidden weights (transposed PyTorch layout)
#   bhhn_ref : (1, H)        hidden bias of the n gate (kept separate: * r)
#   wfc_ref  : (H, Dp)       transposed fc.weight, lane-padded to Dp
#   bfc_ref  : (1, Dp)
#   out_ref  : (TC*Bp, Dp)   this chunk's output rows (lane-dense store)
#   h_ref    : (Bp, H)       persistent hidden-state scratch (carried across grid)
#   hbuf_ref : (TC*Bp, H)    per-chunk hidden states for the fused FC matmul
# -----------------------------------------------------------------------------
def gru_fc_kernel(gi_ref, whh_ref, bhhn_ref, wfc_ref, bfc_ref,
                  out_ref, h_ref, hbuf_ref):
    TC, Bp, H3 = gi_ref.shape
    H = H3 // 3

    # h0 = zeros at the start of the sequence (first chunk only).
    @pl.when(pl.program_id(0) == 0)
    def _():
        h_ref[...] = jnp.zeros_like(h_ref)

    whh = whh_ref[...]                                        # (H, 3H)
    # Hoist the bias broadcast out of the loop (JAX does not CSE broadcast_in_dim).
    bhh_n = jnp.broadcast_to(bhhn_ref[...], (Bp, H))

    def step(t, h_prev):
        gi_t = gi_ref[t]                                      # (Bp, 3H)
        # Single fused hidden matmul per step (one MXU push instead of three).
        gh = jnp.dot(h_prev, whh, preferred_element_type=jnp.float32)  # (Bp, 3H)

        # PyTorch GRU gate order: r, z, n  (n uses r * (W_hn h + b_hn)).
        r = jax.nn.sigmoid(gi_t[:, 0:H] + gh[:, 0:H])
        z = jax.nn.sigmoid(gi_t[:, H:2 * H] + gh[:, H:2 * H])
        n = jnp.tanh(gi_t[:, 2 * H:3 * H] + r * (gh[:, 2 * H:3 * H] + bhh_n))
        h_new = (1.0 - z) * n + z * h_prev

        row = pl.multiple_of(t * Bp, Bp)                      # aligned sublane store
        hbuf_ref[pl.ds(row, Bp), :] = h_new
        return h_new                                          # carry h in registers

    h_last = lax.fori_loop(0, TC, step, h_ref[...], unroll=4)
    h_ref[...] = h_last                                       # carry to next chunk

    # FC head once per chunk: one matmul + one lane-dense store for TC steps.
    out = jnp.dot(hbuf_ref[...], wfc_ref[...],
                  preferred_element_type=jnp.float32) + bfc_ref[...]
    out_ref[...] = out.astype(out_ref.dtype)


# -----------------------------------------------------------------------------
# Wrapper: embedding gather, bias folding, padding, pallas_call, layout fixups.
# -----------------------------------------------------------------------------
def gru_model_forward(x_labels, params, *, input_dim, hidden_dim, output_dim,
                      chunk_t=4):
    """x_labels: int32 (B, T) class indices.  Returns (B, T, output_dim) f32."""
    del input_dim  # only used implicitly through the weight shapes
    B, T = x_labels.shape
    H = hidden_dim
    Bp = _round_up(B, 8)                      # f32 sublane multiple
    TC = min(chunk_t, T)                      # time-chunk size (grid axis)
    T_pad = _round_up(T, TC)
    num_chunks = T_pad // TC
    Dp = _round_up(max(output_dim, 128), 128)  # lane-dense output store

    w_ih_t = params["w_ih_t"]                 # (D_in, 3H)
    b_ih = params["b_ih"]                     # (1, 3H)
    b_hh = params["b_hh"]                     # (1, 3H)

    # Fold b_ih and the r/z parts of b_hh into the input projection; b_hh_n
    # must stay separate because it sits inside the r * (.) term.
    b_fold = jnp.concatenate(
        [b_ih[:, :2 * H] + b_hh[:, :2 * H], b_ih[:, 2 * H:]], axis=1)  # (1, 3H)
    bhh_n = b_hh[:, 2 * H:3 * H]                                       # (1, H)

    # one_hot(x) @ W_ih^T is a row gather: do an embedding lookup instead.
    # TODO(synk): gather clamps out-of-range labels instead of zeroing like one-hot.
    gi = jnp.take(w_ih_t, x_labels, axis=0) + b_fold          # (B, T, 3H)
    gi = jnp.transpose(gi, (1, 0, 2))                         # (T, B, 3H)
    gi = jnp.pad(gi, ((0, T_pad - T), (0, Bp - B), (0, 0)))   # (T_pad, Bp, 3H)

    w_hh_t = params["w_hh_t"]                                 # (H, 3H), unsplit
    w_fc_pad = jnp.pad(params["w_fc_t"], ((0, 0), (0, Dp - output_dim)))  # (H, Dp)
    b_fc_pad = jnp.pad(params["b_fc"], ((0, 0), (0, Dp - output_dim)))    # (1, Dp)

    grid_spec = pltpu.PrefetchScalarGridSpec(
        num_scalar_prefetch=0,
        grid=(num_chunks,),
        in_specs=[
            pl.BlockSpec((TC, Bp, 3 * H), lambda c: (c, 0, 0)),   # gi chunk (streamed)
            pl.BlockSpec((H, 3 * H), lambda c: (0, 0)),           # w_hh (resident)
            pl.BlockSpec((1, H), lambda c: (0, 0)),               # b_hh_n
            pl.BlockSpec((H, Dp), lambda c: (0, 0)),              # w_fc
            pl.BlockSpec((1, Dp), lambda c: (0, 0)),              # b_fc
        ],
        out_specs=pl.BlockSpec((TC * Bp, Dp), lambda c: (c, 0)),  # out chunk
        scratch_shapes=[
            pltpu.VMEM((Bp, H), jnp.float32),        # persistent hidden state
            pltpu.VMEM((TC * Bp, H), jnp.float32),   # per-chunk hidden buffer
        ],
    )

    out_flat = pl.pallas_call(
        gru_fc_kernel,
        out_shape=jax.ShapeDtypeStruct((T_pad * Bp, Dp), jnp.float32),
        grid_spec=grid_spec,
        compiler_params=pltpu.CompilerParams(
            # time-chunk axis is inherently serial (h carried in scratch)
            dimension_semantics=("arbitrary",),
            # safe on all generations (v7x physical VMEM is 64 MiB)
            vmem_limit_bytes=32 * 1024 * 1024,
        ),
    )(gi, w_hh_t, bhh_n, w_fc_pad, b_fc_pad)

    # Drop time/batch/lane padding and restore batch_first layout.
    out = out_flat.reshape(T_pad, Bp, Dp)[:T, :B, :output_dim]
    return jnp.transpose(out, (1, 0, 2))                      # (B, T, D_out)


# -----------------------------------------------------------------------------
# Pure-JAX reference (mirrors torch.nn.GRU + nn.Linear semantics, via one-hot)
# -----------------------------------------------------------------------------
def gru_model_reference(x_labels, params, *, input_dim, hidden_dim, output_dim):
    B, T = x_labels.shape
    H = hidden_dim
    x_oh = jax.nn.one_hot(x_labels, input_dim, dtype=jnp.float32)  # (B, T, D_in)
    w_ih_t, w_hh_t = params["w_ih_t"], params["w_hh_t"]
    b_ih, b_hh = params["b_ih"], params["b_hh"]
    w_fc_t, b_fc = params["w_fc_t"], params["b_fc"]

    def step(h, x_t):
        gi = x_t @ w_ih_t + b_ih
        gh = h @ w_hh_t + b_hh
        r = jax.nn.sigmoid(gi[:, :H] + gh[:, :H])
        z = jax.nn.sigmoid(gi[:, H:2 * H] + gh[:, H:2 * H])
        n = jnp.tanh(gi[:, 2 * H:] + r * gh[:, 2 * H:])
        h_new = (1.0 - z) * n + z * h
        return h_new, h_new

    h0 = jnp.zeros((B, H), jnp.float32)
    _, hs = lax.scan(step, h0, jnp.transpose(x_oh, (1, 0, 2)))  # (T, B, H)
    out = hs @ w_fc_t + b_fc                                    # (T, B, D_out)
    return jnp.transpose(out, (1, 0, 2))


# -----------------------------------------------------------------------------
# Deterministic parameter init (PyTorch-style uniform(-1/sqrt(H), 1/sqrt(H)))
# -----------------------------------------------------------------------------
def init_params(key, input_dim, hidden_dim, output_dim):
    k = 1.0 / jnp.sqrt(hidden_dim)
    keys = jax.random.split(key, 6)
    # PyTorch shapes: weight_ih_l0 (3H, D_in), weight_hh_l0 (3H, H),
    #                 fc.weight (D_out, H).  Stored transposed for x @ W^T.
    w_ih = jax.random.uniform(keys[0], (3 * hidden_dim, input_dim), jnp.float32, -k, k)
    w_hh = jax.random.uniform(keys[1], (3 * hidden_dim, hidden_dim), jnp.float32, -k, k)
    b_ih = jax.random.uniform(keys[2], (3 * hidden_dim,), jnp.float32, -k, k)
    b_hh = jax.random.uniform(keys[3], (3 * hidden_dim,), jnp.float32, -k, k)
    w_fc = jax.random.uniform(keys[4], (output_dim, hidden_dim), jnp.float32, -k, k)
    b_fc = jax.random.uniform(keys[5], (output_dim,), jnp.float32, -k, k)
    return {
        "w_ih_t": w_ih.T,                    # (D_in, 3H)
        "w_hh_t": w_hh.T,                    # (H, 3H)
        "b_ih": b_ih.reshape(1, -1),         # (1, 3H)
        "b_hh": b_hh.reshape(1, -1),         # (1, 3H)
        "w_fc_t": w_fc.T,                    # (H, D_out)
        "b_fc": b_fc.reshape(1, -1),         # (1, D_out)
    }


if __name__ == "__main__":
    input_dim, hidden_dim, output_dim = 4, 32, 4
    batch, seq = 2, 8

    key = jax.random.PRNGKey(0)
    pkey, xkey = jax.random.split(key)
    params = init_params(pkey, input_dim, hidden_dim, output_dim)

    # Integer class labels in [0, input_dim), as label2onehot expects.
    x_labels = jax.random.randint(xkey, (batch, seq), 0, input_dim, dtype=jnp.int32)

    out = gru_model_forward(x_labels, params,
                            input_dim=input_dim,
                            hidden_dim=hidden_dim,
                            output_dim=output_dim)
    out = jax.block_until_ready(out)

    ref = gru_model_reference(x_labels, params,
                              input_dim=input_dim,
                              hidden_dim=hidden_dim,
                              output_dim=output_dim)
    assert out.shape == (batch, seq, output_dim)
    assert jnp.allclose(out, ref, atol=1e-5, rtol=1e-5), "mismatch vs JAX reference"

    print("KERNEL_OK")
</pallas_src>

<mosaic_0001>
module attributes {stable_mosaic.version = 11 : i64} {
  func.func @gru_fc_kernel(%arg0: i32, %arg1: memref<4x8x96xf32, #tpu.memory_space<vmem>>, %arg2: memref<32x96xf32, #tpu.memory_space<vmem>>, %arg3: memref<1x32xf32, #tpu.memory_space<vmem>>, %arg4: memref<32x128xf32, #tpu.memory_space<vmem>>, %arg5: memref<1x128xf32, #tpu.memory_space<vmem>>, %arg6: memref<32x128xf32, #tpu.memory_space<vmem>>, %arg7: memref<8x32xf32, #tpu.memory_space<vmem>>, %arg8: memref<32x32xf32, #tpu.memory_space<vmem>>) attributes {dimension_semantics = [#tpu.dimension_semantics<arbitrary>], iteration_bounds = array<i64: 2>, scalar_prefetch = 0 : i64, scratch_operands = 2 : i64, tpu.core_type = #tpu.core_type<tc>, window_params = [{transform_indices = @transform_0, window_bounds = array<i64: 4, 8, 96>}, {pipeline_mode = #tpu.pipeline_mode<synchronous>, transform_indices = @transform_1, window_bounds = array<i64: 32, 96>}, {pipeline_mode = #tpu.pipeline_mode<synchronous>, transform_indices = @transform_2, window_bounds = array<i64: 1, 32>}, {pipeline_mode = #tpu.pipeline_mode<synchronous>, transform_indices = @transform_3, window_bounds = array<i64: 32, 128>}, {pipeline_mode = #tpu.pipeline_mode<synchronous>, transform_indices = @transform_4, window_bounds = array<i64: 1, 128>}, {transform_indices = @transform_5, window_bounds = array<i64: 32, 128>}]} {
    %c0_i32 = arith.constant 0 : i32
    %0 = arith.cmpi eq, %arg0, %c0_i32 : i32
    %1 = arith.extui %0 : i1 to i32
    %c0_i32_0 = arith.constant 0 : i32
    %2 = arith.cmpi ne, %1, %c0_i32_0 : i32
    scf.if %2 {
      %cst_48 = arith.constant 0.000000e+00 : f32
      %156 = vector.broadcast %cst_48 : f32 to vector<8x32xf32>
      %c0_49 = arith.constant 0 : index
      %c0_50 = arith.constant 0 : index
      %157 = vector.load %arg7[%c0_49, %c0_50] : memref<8x32xf32, #tpu.memory_space<vmem>>, vector<8x32xf32>
      tpu.vector_store %arg7[%c0_49, %c0_50], %156 {strides = array<i32>} : memref<8x32xf32, #tpu.memory_space<vmem>>, vector<8x32xf32>,
    } else {
    }
    %c0 = arith.constant 0 : index
    %c0_1 = arith.constant 0 : index
    %3 = vector.load %arg2[%c0, %c0_1] : memref<32x96xf32, #tpu.memory_space<vmem>>, vector<32x96xf32>
    %c0_2 = arith.constant 0 : index
    %c0_3 = arith.constant 0 : index
    %4 = vector.load %arg3[%c0_2, %c0_3] : memref<1x32xf32, #tpu.memory_space<vmem>>, vector<1x32xf32>
    %5 = vector.shape_cast %4 : vector<1x32xf32> to vector<1x32xf32>
    %6 = vector.broadcast %5 : vector<1x32xf32> to vector<8x32xf32>
    %c0_4 = arith.constant 0 : index
    %c0_5 = arith.constant 0 : index
    %7 = vector.load %arg7[%c0_4, %c0_5] : memref<8x32xf32, #tpu.memory_space<vmem>>, vector<8x32xf32>
    %c0_i32_6 = arith.constant 0 : i32
    %8 = arith.index_cast %c0_i32_6 : i32 to index
    %c0_7 = arith.constant 0 : index
    %c0_8 = arith.constant 0 : index
    %9 = vector.load %arg1[%8, %c0_7, %c0_8] : memref<4x8x96xf32, #tpu.memory_space<vmem>>, vector<1x8x96xf32>
    %10 = vector.shape_cast %9 : vector<1x8x96xf32> to vector<8x96xf32>
    %cst = arith.constant dense<0.000000e+00> : vector<8x96xf32>
    %11 = tpu.matmul %7, %3, %cst {dimension_numbers = #tpu.dot_dimension_numbers<[1], [0], [0], [1], [0, 0, 1, 1], [], []>} : vector<8x32xf32>, vector<32x96xf32>, vector<8x96xf32> -> vector<8x96xf32>
    %12 = vector.extract_strided_slice %10 {offsets = [0, 0], sizes = [8, 32], strides = [1, 1]} : vector<8x96xf32> to vector<8x32xf32>
    %13 = vector.extract_strided_slice %11 {offsets = [0, 0], sizes = [8, 32], strides = [1, 1]} : vector<8x96xf32> to vector<8x32xf32>
    %14 = arith.addf %12, %13 : vector<8x32xf32>
    %15 = arith.negf %14 : vector<8x32xf32>
    %16 = math.exp %15 : vector<8x32xf32>
    %cst_9 = arith.constant 1.000000e+00 : f32
    %17 = vector.broadcast %cst_9 : f32 to vector<8x32xf32>
    %18 = arith.addf %17, %16 : vector<8x32xf32>
    %19 = arith.divf %17, %18 : vector<8x32xf32>
    %20 = vector.extract_strided_slice %10 {offsets = [0, 32], sizes = [8, 32], strides = [1, 1]} : vector<8x96xf32> to vector<8x32xf32>
    %21 = vector.extract_strided_slice %11 {offsets = [0, 32], sizes = [8, 32], strides = [1, 1]} : vector<8x96xf32> to vector<8x32xf32>
    %22 = arith.addf %20, %21 : vector<8x32xf32>
    %23 = arith.negf %22 : vector<8x32xf32>
    %24 = math.exp %23 : vector<8x32xf32>
    %cst_10 = arith.constant 1.000000e+00 : f32
    %25 = vector.broadcast %cst_10 : f32 to vector<8x32xf32>
    %26 = arith.addf %25, %24 : vector<8x32xf32>
    %27 = arith.divf %25, %26 : vector<8x32xf32>
    %28 = vector.extract_strided_slice %10 {offsets = [0, 64], sizes = [8, 32], strides = [1, 1]} : vector<8x96xf32> to vector<8x32xf32>
    %29 = vector.extract_strided_slice %11 {offsets = [0, 64], sizes = [8, 32], strides = [1, 1]} : vector<8x96xf32> to vector<8x32xf32>
    %30 = arith.addf %29, %6 : vector<8x32xf32>
    %31 = arith.mulf %19, %30 : vector<8x32xf32>
    %32 = arith.addf %28, %31 : vector<8x32xf32>
    %33 = math.tanh %32 : vector<8x32xf32>
    %cst_11 = arith.constant 1.000000e+00 : f32
    %34 = vector.broadcast %cst_11 : f32 to vector<8x32xf32>
    %35 = arith.subf %34, %27 : vector<8x32xf32>
    %36 = arith.mulf %35, %33 : vector<8x32xf32>
    %37 = arith.mulf %27, %7 : vector<8x32xf32>
    %38 = arith.addf %36, %37 : vector<8x32xf32>
    %c8_i32 = arith.constant 8 : i32
    %39 = arith.muli %c0_i32_6, %c8_i32 : i32
    %40 = tpu.assume_multiple %39, 8 : i32
    %41 = arith.index_cast %40 : i32 to index
    %c0_12 = arith.constant 0 : index
    %42 = vector.load %arg8[%41, %c0_12] : memref<32x32xf32, #tpu.memory_space<vmem>>, vector<8x32xf32>
    tpu.vector_store %arg8[%41, %c0_12], %38 {strides = array<i32>} : memref<32x32xf32, #tpu.memory_space<vmem>>, vector<8x32xf32>,
    %c1_i32 = arith.constant 1 : i32
    %43 = arith.index_cast %c1_i32 : i32 to index
    %c0_13 = arith.constant 0 : index
    %c0_14 = arith.constant 0 : index
    %44 = vector.load %arg1[%43, %c0_13, %c0_14] : memref<4x8x96xf32, #tpu.memory_space<vmem>>, vector<1x8x96xf32>
    %45 = vector.shape_cast %44 : vector<1x8x96xf32> to vector<8x96xf32>
    %cst_15 = arith.constant dense<0.000000e+00> : vector<8x96xf32>
    %46 = tpu.matmul %38, %3, %cst_15 {dimension_numbers = #tpu.dot_dimension_numbers<[1], [0], [0], [1], [0, 0, 1, 1], [], []>} : vector<8x32xf32>, vector<32x96xf32>, vector<8x96xf32> -> vector<8x96xf32>
    %47 = vector.extract_strided_slice %45 {offsets = [0, 0], sizes = [8, 32], strides = [1, 1]} : vector<8x96xf32> to vector<8x32xf32>
    %48 = vector.extract_strided_slice %46 {offsets = [0, 0], sizes = [8, 32], strides = [1, 1]} : vector<8x96xf32> to vector<8x32xf32>
    %49 = arith.addf %47, %48 : vector<8x32xf32>
    %50 = arith.negf %49 : vector<8x32xf32>
    %51 = math.exp %50 : vector<8x32xf32>
    %cst_16 = arith.constant 1.000000e+00 : f32
    %52 = vector.broadcast %cst_16 : f32 to vector<8x32xf32>
    %53 = arith.addf %52, %51 : vector<8x32xf32>
    %54 = arith.divf %52, %53 : vector<8x32xf32>
    %55 = vector.extract_strided_slice %45 {offsets = [0, 32], sizes = [8, 32], strides = [1, 1]} : vector<8x96xf32> to vector<8x32xf32>
    %56 = vector.extract_strided_slice %46 {offsets = [0, 32], sizes = [8, 32], strides = [1, 1]} : vector<8x96xf32> to vector<8x32xf32>
    %57 = arith.addf %55, %56 : vector<8x32xf32>
    %58 = arith.negf %57 : vector<8x32xf32>
    %59 = math.exp %58 : vector<8x32xf32>
    %cst_17 = arith.constant 1.000000e+00 : f32
    %60 = vector.broadcast %cst_17 : f32 to vector<8x32xf32>
    %61 = arith.addf %60, %59 : vector<8x32xf32>
    %62 = arith.divf %60, %61 : vector<8x32xf32>
    %63 = vector.extract_strided_slice %45 {offsets = [0, 64], sizes = [8, 32], strides = [1, 1]} : vector<8x96xf32> to vector<8x32xf32>
    %64 = vector.extract_strided_slice %46 {offsets = [0, 64], sizes = [8, 32], strides = [1, 1]} : vector<8x96xf32> to vector<8x32xf32>
    %65 = arith.addf %64, %6 : vector<8x32xf32>
    %66 = arith.mulf %54, %65 : vector<8x32xf32>
    %67 = arith.addf %63, %66 : vector<8x32xf32>
    %68 = math.tanh %67 : vector<8x32xf32>
    %cst_18 = arith.constant 1.000000e+00 : f32
    %69 = vector.broadcast %cst_18 : f32 to vector<8x32xf32>
    %70 = arith.subf %69, %62 : vector<8x32xf32>
    %71 = arith.mulf %70, %68 : vector<8x32xf32>
    %72 = arith.mulf %62, %38 : vector<8x32xf32>
    %73 = arith.addf %71, %72 : vector<8x32xf32>
    %c8_i32_19 = arith.constant 8 : i32
    %74 = arith.muli %c1_i32, %c8_i32_19 : i32
    %75 = tpu.assume_multiple %74, 8 : i32
    %76 = arith.index_cast %75 : i32 to index
    %c0_20 = arith.constant 0 : index
    %77 = vector.load %arg8[%76, %c0_20] : memref<32x32xf32, #tpu.memory_space<vmem>>, vector<8x32xf32>
    tpu.vector_store %arg8[%76, %c0_20], %73 {strides = array<i32>} : memref<32x32xf32, #tpu.memory_space<vmem>>, vector<8x32xf32>,
    %c2_i32 = arith.constant 2 : i32
    %78 = arith.index_cast %c2_i32 : i32 to index
    %c0_21 = arith.constant 0 : index
    %c0_22 = arith.constant 0 : index
    %79 = vector.load %arg1[%78, %c0_21, %c0_22] : memref<4x8x96xf32, #tpu.memory_space<vmem>>, vector<1x8x96xf32>
    %80 = vector.shape_cast %79 : vector<1x8x96xf32> to vector<8x96xf32>
    %cst_23 = arith.constant dense<0.000000e+00> : vector<8x96xf32>
    %81 = tpu.matmul %73, %3, %cst_23 {dimension_numbers = #tpu.dot_dimension_numbers<[1], [0], [0], [1], [0, 0, 1, 1], [], []>} : vector<8x32xf32>, vector<32x96xf32>, vector<8x96xf32> -> vector<8x96xf32>
    %82 = vector.extract_strided_slice %80 {offsets = [0, 0], sizes = [8, 32], strides = [1, 1]} : vector<8x96xf32> to vector<8x32xf32>
    %83 = vector.extract_strided_slice %81 {offsets = [0, 0], sizes = [8, 32], strides = [1, 1]} : vector<8x96xf32> to vector<8x32xf32>
    %84 = arith.addf %82, %83 : vector<8x32xf32>
    %85 = arith.negf %84 : vector<8x32xf32>
    %86 = math.exp %85 : vector<8x32xf32>
    %cst_24 = arith.constant 1.000000e+00 : f32
    %87 = vector.broadcast %cst_24 : f32 to vector<8x32xf32>
    %88 = arith.addf %87, %86 : vector<8x32xf32>
    %89 = arith.divf %87, %88 : vector<8x32xf32>
    %90 = vector.extract_strided_slice %80 {offsets = [0, 32], sizes = [8, 32], strides = [1, 1]} : vector<8x96xf32> to vector<8x32xf32>
    %91 = vector.extract_strided_slice %81 {offsets = [0, 32], sizes = [8, 32], strides = [1, 1]} : vector<8x96xf32> to vector<8x32xf32>
    %92 = arith.addf %90, %91 : vector<8x32xf32>
    %93 = arith.negf %92 : vector<8x32xf32>
    %94 = math.exp %93 : vector<8x32xf32>
    %cst_25 = arith.constant 1.000000e+00 : f32
    %95 = vector.broadcast %cst_25 : f32 to vector<8x32xf32>
    %96 = arith.addf %95, %94 : vector<8x32xf32>
    %97 = arith.divf %95, %96 : vector<8x32xf32>
    %98 = vector.extract_strided_slice %80 {offsets = [0, 64], sizes = [8, 32], strides = [1, 1]} : vector<8x96xf32> to vector<8x32xf32>
    %99 = vector.extract_strided_slice %81 {offsets = [0, 64], sizes = [8, 32], strides = [1, 1]} : vector<8x96xf32> to vector<8x32xf32>
    %100 = arith.addf %99, %6 : vector<8x32xf32>
    %101 = arith.mulf %89, %100 : vector<8x32xf32>
    %102 = arith.addf %98, %101 : vector<8x32xf32>
    %103 = math.tanh %102 : vector<8x32xf32>
    %cst_26 = arith.constant 1.000000e+00 : f32
    %104 = vector.broadcast %cst_26 : f32 to vector<8x32xf32>
    %105 = arith.subf %104, %97 : vector<8x32xf32>
    %106 = arith.mulf %105, %103 : vector<8x32xf32>
    %107 = arith.mulf %97, %73 : vector<8x32xf32>
    %108 = arith.addf %106, %107 : vector<8x32xf32>
    %c8_i32_27 = arith.constant 8 : i32
    %109 = arith.muli %c2_i32, %c8_i32_27 : i32
    %110 = tpu.assume_multiple %109, 8 : i32
    %111 = arith.index_cast %110 : i32 to index
    %c0_28 = arith.constant 0 : index
    %112 = vector.load %arg8[%111, %c0_28] : memref<32x32xf32, #tpu.memory_space<vmem>>, vector<8x32xf32>
    tpu.vector_store %arg8[%111, %c0_28], %108 {strides = array<i32>} : memref<32x32xf32, #tpu.memory_space<vmem>>, vector<8x32xf32>,
    %c3_i32 = arith.constant 3 : i32
    %113 = arith.index_cast %c3_i32 : i32 to index
    %c0_29 = arith.constant 0 : index
    %c0_30 = arith.constant 0 : index
    %114 = vector.load %arg1[%113, %c0_29, %c0_30] : memref<4x8x96xf32, #tpu.memory_space<vmem>>, vector<1x8x96xf32>
    %115 = vector.shape_cast %114 : vector<1x8x96xf32> to vector<8x96xf32>
    %cst_31 = arith.constant dense<0.000000e+00> : vector<8x96xf32>
    %116 = tpu.matmul %108, %3, %cst_31 {dimension_numbers = #tpu.dot_dimension_numbers<[1], [0], [0], [1], [0, 0, 1, 1], [], []>} : vector<8x32xf32>, vector<32x96xf32>, vector<8x96xf32> -> vector<8x96xf32>
    %117 = vector.extract_strided_slice %115 {offsets = [0, 0], sizes = [8, 32], strides = [1, 1]} : vector<8x96xf32> to vector<8x32xf32>
    %118 = vector.extract_strided_slice %116 {offsets = [0, 0], sizes = [8, 32], strides = [1, 1]} : vector<8x96xf32> to vector<8x32xf32>
    %119 = arith.addf %117, %118 : vector<8x32xf32>
    %120 = arith.negf %119 : vector<8x32xf32>
    %121 = math.exp %120 : vector<8x32xf32>
    %cst_32 = arith.constant 1.000000e+00 : f32
    %122 = vector.broadcast %cst_32 : f32 to vector<8x32xf32>
    %123 = arith.addf %122, %121 : vector<8x32xf32>
    %124 = arith.divf %122, %123 : vector<8x32xf32>
    %125 = vector.extract_strided_slice %115 {offsets = [0, 32], sizes = [8, 32], strides = [1, 1]} : vector<8x96xf32> to vector<8x32xf32>
    %126 = vector.extract_strided_slice %116 {offsets = [0, 32], sizes = [8, 32], strides = [1, 1]} : vector<8x96xf32> to vector<8x32xf32>
    %127 = arith.addf %125, %126 : vector<8x32xf32>
    %128 = arith.negf %127 : vector<8x32xf32>
    %129 = math.exp %128 : vector<8x32xf32>
    %cst_33 = arith.constant 1.000000e+00 : f32
    %130 = vector.broadcast %cst_33 : f32 to vector<8x32xf32>
    %131 = arith.addf %130, %129 : vector<8x32xf32>
    %132 = arith.divf %130, %131 : vector<8x32xf32>
    %133 = vector.extract_strided_slice %115 {offsets = [0, 64], sizes = [8, 32], strides = [1, 1]} : vector<8x96xf32> to vector<8x32xf32>
    %134 = vector.extract_strided_slice %116 {offsets = [0, 64], sizes = [8, 32], strides = [1, 1]} : vector<8x96xf32> to vector<8x32xf32>
    %135 = arith.addf %134, %6 : vector<8x32xf32>
    %136 = arith.mulf %124, %135 : vector<8x32xf32>
    %137 = arith.addf %133, %136 : vector<8x32xf32>
    %138 = math.tanh %137 : vector<8x32xf32>
    %cst_34 = arith.constant 1.000000e+00 : f32
    %139 = vector.broadcast %cst_34 : f32 to vector<8x32xf32>
    %140 = arith.subf %139, %132 : vector<8x32xf32>
    %141 = arith.mulf %140, %138 : vector<8x32xf32>
    %142 = arith.mulf %132, %108 : vector<8x32xf32>
    %143 = arith.addf %141, %142 : vector<8x32xf32>
    %c8_i32_35 = arith.constant 8 : i32
    %144 = arith.muli %c3_i32, %c8_i32_35 : i32
    %145 = tpu.assume_multiple %144, 8 : i32
    %146 = arith.index_cast %145 : i32 to index
    %c0_36 = arith.constant 0 : index
    %147 = vector.load %arg8[%146, %c0_36] : memref<32x32xf32, #tpu.memory_space<vmem>>, vector<8x32xf32>
    tpu.vector_store %arg8[%146, %c0_36], %143 {strides = array<i32>} : memref<32x32xf32, #tpu.memory_space<vmem>>, vector<8x32xf32>,
    %c4_i32 = arith.constant 4 : i32
    %c0_37 = arith.constant 0 : index
    %c0_38 = arith.constant 0 : index
    %148 = vector.load %arg7[%c0_37, %c0_38] : memref<8x32xf32, #tpu.memory_space<vmem>>, vector<8x32xf32>
    tpu.vector_store %arg7[%c0_37, %c0_38], %143 {strides = array<i32>} : memref<8x32xf32, #tpu.memory_space<vmem>>, vector<8x32xf32>,
    %c0_39 = arith.constant 0 : index
    %c0_40 = arith.constant 0 : index
    %149 = vector.load %arg8[%c0_39, %c0_40] : memref<32x32xf32, #tpu.memory_space<vmem>>, vector<32x32xf32>
    %c0_41 = arith.constant 0 : index
    %c0_42 = arith.constant 0 : index
    %150 = vector.load %arg4[%c0_41, %c0_42] : memref<32x128xf32, #tpu.memory_space<vmem>>, vector<32x128xf32>
    %cst_43 = arith.constant dense<0.000000e+00> : vector<32x128xf32>
    %151 = tpu.matmul %149, %150, %cst_43 {dimension_numbers = #tpu.dot_dimension_numbers<[1], [0], [0], [1], [0, 0, 1, 1], [], []>} : vector<32x32xf32>, vector<32x128xf32>, vector<32x128xf32> -> vector<32x128xf32>
    %c0_44 = arith.constant 0 : index
    %c0_45 = arith.constant 0 : index
    %152 = vector.load %arg5[%c0_44, %c0_45] : memref<1x128xf32, #tpu.memory_space<vmem>>, vector<1x128xf32>
    %153 = vector.broadcast %152 : vector<1x128xf32> to vector<32x128xf32>
    %154 = arith.addf %151, %153 : vector<32x128xf32>
    %c0_46 = arith.constant 0 : index
    %c0_47 = arith.constant 0 : index
    %155 = vector.load %arg6[%c0_46, %c0_47] : memref<32x128xf32, #tpu.memory_space<vmem>>, vector<32x128xf32>
    tpu.vector_store %arg6[%c0_46, %c0_47], %154 {strides = array<i32>} : memref<32x128xf32, #tpu.memory_space<vmem>>, vector<32x128xf32>,
    return
  }
  func.func @transform_0(%arg0: i32) -> (i32, i32, i32) {
    %c0_i32 = arith.constant 0 : i32
    %c0_i32_0 = arith.constant 0 : i32
    %c0_i32_1 = arith.constant 0 : i32
    return %arg0, %c0_i32, %c0_i32_0 : i32, i32, i32
  }
  func.func @transform_1(%arg0: i32) -> (i32, i32) {
    %c0_i32 = arith.constant 0 : i32
    %c0_i32_0 = arith.constant 0 : i32
    %c0_i32_1 = arith.constant 0 : i32
    return %c0_i32, %c0_i32_0 : i32, i32
  }
  func.func @transform_2(%arg0: i32) -> (i32, i32) {
    %c0_i32 = arith.constant 0 : i32
    %c0_i32_0 = arith.constant 0 : i32
    %c0_i32_1 = arith.constant 0 : i32
    return %c0_i32, %c0_i32_0 : i32, i32
  }
  func.func @transform_3(%arg0: i32) -> (i32, i32) {
    %c0_i32 = arith.constant 0 : i32
    %c0_i32_0 = arith.constant 0 : i32
    %c0_i32_1 = arith.constant 0 : i32
    return %c0_i32, %c0_i32_0 : i32, i32
  }
  func.func @transform_4(%arg0: i32) -> (i32, i32) {
    %c0_i32 = arith.constant 0 : i32
    %c0_i32_0 = arith.constant 0 : i32
    %c0_i32_1 = arith.constant 0 : i32
    return %c0_i32, %c0_i32_0 : i32, i32
  }
  func.func @transform_5(%arg0: i32) -> (i32, i32) {
    %c0_i32 = arith.constant 0 : i32
    %c0_i32_0 = arith.constant 0 : i32
    return %arg0, %c0_i32 : i32, i32
  }
}

</mosaic_0001>

<llo_original>
// kernel: tpu_custom_call.1
$region0: #{tpu_custom_call.1}
  #allocation0 [shape = 'u32[]', space=smem, size = 0x4, offset = 0x4, fixed_abs, tag = 'smem constant byte address 0x4 - core index']
  #allocation1 [shape = 'u32[144,128]{1,0:T(1,128)}', space=vmem, size = 0x12000, scoped, tag = 'internal scratch']
  #allocation2 [shape = 'f32[8,32]{1,0:T(8,128)}', space=vmem, size = 0x1000, scoped, tag = 'scratch operand']
  #allocation3 [shape = 'f32[32,32]{1,0:T(8,128)}', space=vmem, size = 0x4000, scoped, tag = 'scratch operand']
  %s0 = inlined_call_operand.hbm [shape: f32[8,8,96], index: 0, kind: input, shape index: {}]
  %s1 = inlined_call_operand.hbm [shape: f32[32,96], index: 1, kind: input, shape index: {}]
  %s2 = inlined_call_operand.vmem [shape: f32[1,32], index: 2, kind: input, shape index: {}]
  %s3 = inlined_call_operand.hbm [shape: f32[32,128], index: 3, kind: input, shape index: {}]
  %s4 = inlined_call_operand.vmem [shape: f32[1,128], index: 4, kind: input, shape index: {}]
  %s5 = inlined_call_operand.hbm [shape: f32[64,128], index: 5, kind: output, shape index: {}]
  %s6 = sld [smem:[#allocation0]]
  $region69: #{tpu_custom_call.1} parent=0
    _
  %s8 = ssub.s32 1, %s6
  %s9 = scalar_select 0, %s8, %s6
  $region1: #{tpu_custom_call.1} parent=0
    #allocation4 [shape = 'u8[32768]{0}', space=vmem, size = 0x8000, scoped, tag = 'input window, operand 0']
    #allocation5 [shape = 's32[2]{0}', space=sflag, size = 0x8, scoped, tag = 'scoped memory for tpu_custom_call.1']
    #allocation6 [shape = 's32[2]{0}', space=sflag, size = 0x8, scoped, tag = 'scoped memory for tpu_custom_call.1']
    #allocation7 [shape = 'u8[16384]{0}', space=vmem, size = 0x4000, scoped, tag = 'input window, operand 1, single buffered']
    #allocation8 [shape = 's32[1]{0}', space=sflag, size = 0x4, scoped, tag = 'scoped memory for tpu_custom_call.1']
    #allocation9 [shape = 'u8[16384]{0}', space=vmem, size = 0x4000, scoped, tag = 'input window, operand 3, single buffered']
    #allocation10 [shape = 'u8[32768]{0}', space=vmem, size = 0x8000, scoped, tag = 'output window, operand 0']
    %10 = vsyncpa [#allocation5], 0
    %s11 = scalar_lea.sflag [#allocation5], 1
    %12 = vsyncpa %s11, 0
    %13 = vsyncpa [#allocation8], 0
    %14 = vsyncpa [#allocation6], 0
    %s15 = scalar_lea.sflag [#allocation6], 1
    %16 = vsyncpa %s15, 0
    loop: start=0, step=1, limit=4
    $region2: #{tpu_custom_call.1} parent=1 // loop_pre_header
      _
    $region3: #{tpu_custom_call.1} parent=1 // loop_header
      %s18 = sphi 0, %s22
      %p19 = scmp.ge.s32.totalorder %s18, 4
      %s28 = sphi 0, %s30
      %s31 = sphi 0, %s28
      %s32 = sphi 0, %s31
      %s48 = sphi 0, %s32
      %s52 = sphi 0, %s52
      %s54 = sphi 0, %s52
      %s55 = sphi 0, %s54
      %s69 = sphi 0, %s55
      %s73 = sphi 0, %s73
      %s75 = sphi 0, %s73
      %s76 = sphi 0, %s75
      %s90 = sphi 0, %s76
      %s94 = sphi 0, %s94
      %s96 = sphi 0, %s94
      %s97 = sphi 0, %s96
      %s111 = sphi 0, %s97
      %s115 = sphi 0, %s115
      %s117 = sphi 0, %s115
      %s118 = sphi 0, %s117
      %s132 = sphi 0, %s118
      %s138 = sphi 0, %s140
      %s141 = sphi 0, %s138
      %s142 = sphi 0, %s141
      %s158 = sphi 0, %s142
    $region4: #{tpu_custom_call.1} parent=1 // loop_header_branch
      %21 = sbr.rel (%p19) target = $region8
    $region5: #{tpu_custom_call.1} parent=1 // loop_body
      %s23 = ssub.s32 %s18, 1
      %s24 = ssub.s32 %s18, 2
      %s25 = sadd.s32 %s18, 1
      %s26 = ssub.s32 %s18, %s25
      %p27 = scmp.eq.s32.totalorder %s26, 0
      %s29 = sadd.s32 %s28, 1
      %s30 = scalar_select %p27, %s28, %s29
      %p33 = pneg %p27
      %p34 = scmp.eq.s32.totalorder %s18, 1
      %p35 = por %p33, %p34
      %p36 = scmp.ne.s32.totalorder %s28, %s31
      %p37 = scmp.eq.s32.totalorder %s18, 0
      %p38 = por %p36, %p37
      %p39 = scmp.ne.s32.totalorder %s28, %s31
      %p40 = scmp.eq.s32.totalorder %s23, 1
      %p41 = por %p39, %p40
      %p42 = scmp.ne.s32.totalorder %s31, %s32
      %p43 = scmp.eq.s32.totalorder %s23, 0
      %p44 = por %p42, %p43
      %p45 = scmp.ne.s32.totalorder %s31, %s32
      %p46 = scmp.eq.s32.totalorder %s24, 1
      %p47 = por %p45, %p46
      %p49 = scmp.ne.s32.totalorder %s32, %s48
      %p50 = scmp.eq.s32.totalorder %s24, 0
      %p51 = por %p49, %p50
      %s53 = sadd.s32 %s52, 1
      %p56 = scmp.eq.s32.totalorder %s18, 1
      %p57 = scmp.ne.s32.totalorder %s52, %s54
      %p58 = scmp.eq.s32.totalorder %s18, 0
      %p59 = por %p57, %p58
      %p60 = scmp.ne.s32.totalorder %s52, %s54
      %p61 = scmp.eq.s32.totalorder %s23, 1
      %p62 = por %p60, %p61
      %p63 = scmp.ne.s32.totalorder %s54, %s55
      %p64 = scmp.eq.s32.totalorder %s23, 0
      %p65 = por %p63, %p64
      %p66 = scmp.ne.s32.totalorder %s54, %s55
      %p67 = scmp.eq.s32.totalorder %s24, 1
      %p68 = por %p66, %p67
      %p70 = scmp.ne.s32.totalorder %s55, %s69
      %p71 = scmp.eq.s32.totalorder %s24, 0
      %p72 = por %p70, %p71
      %s74 = sadd.s32 %s73, 1
      %p77 = scmp.eq.s32.totalorder %s18, 1
      %p78 = scmp.ne.s32.totalorder %s73, %s75
      %p79 = scmp.eq.s32.totalorder %s18, 0
      %p80 = por %p78, %p79
      %p81 = scmp.ne.s32.totalorder %s73, %s75
      %p82 = scmp.eq.s32.totalorder %s23, 1
      %p83 = por %p81, %p82
      %p84 = scmp.ne.s32.totalorder %s75, %s76
      %p85 = scmp.eq.s32.totalorder %s23, 0
      %p86 = por %p84, %p85
      %p87 = scmp.ne.s32.totalorder %s75, %s76
      %p88 = scmp.eq.s32.totalorder %s24, 1
      %p89 = por %p87, %p88
      %p91 = scmp.ne.s32.totalorder %s76, %s90
      %p92 = scmp.eq.s32.totalorder %s24, 0
      %p93 = por %p91, %p92
      %s95 = sadd.s32 %s94, 1
      %p98 = scmp.eq.s32.totalorder %s18, 1
      %p99 = scmp.ne.s32.totalorder %s94, %s96
      %p100 = scmp.eq.s32.totalorder %s18, 0
      %p101 = por %p99, %p100
      %p102 = scmp.ne.s32.totalorder %s94, %s96
      %p103 = scmp.eq.s32.totalorder %s23, 1
      %p104 = por %p102, %p103
      %p105 = scmp.ne.s32.totalorder %s96, %s97
      %p106 = scmp.eq.s32.totalorder %s23, 0
      %p107 = por %p105, %p106
      %p108 = scmp.ne.s32.totalorder %s96, %s97
      %p109 = scmp.eq.s32.totalorder %s24, 1
      %p110 = por %p108, %p109
      %p112 = scmp.ne.s32.totalorder %s97, %s111
      %p113 = scmp.eq.s32.totalorder %s24, 0
      %p114 = por %p112, %p113
      %s116 = sadd.s32 %s115, 1
      %p119 = scmp.eq.s32.totalorder %s18, 1
      %p120 = scmp.ne.s32.totalorder %s115, %s117
      %p121 = scmp.eq.s32.totalorder %s18, 0
      %p122 = por %p120, %p121
      %p123 = scmp.ne.s32.totalorder %s115, %s117
      %p124 = scmp.eq.s32.totalorder %s23, 1
      %p125 = por %p123, %p124
      %p126 = scmp.ne.s32.totalorder %s117, %s118
      %p127 = scmp.eq.s32.totalorder %s23, 0
      %p128 = por %p126, %p127
      %p129 = scmp.ne.s32.totalorder %s117, %s118
      %p130 = scmp.eq.s32.totalorder %s24, 1
      %p131 = por %p129, %p130
      %p133 = scmp.ne.s32.totalorder %s118, %s132
      %p134 = scmp.eq.s32.totalorder %s24, 0
      %p135 = por %p133, %p134
      %s136 = ssub.s32 %s18, %s25
      %p137 = scmp.eq.s32.totalorder %s136, 0
      %s139 = sadd.s32 %s138, 1
      %s140 = scalar_select %p137, %s138, %s139
      %p143 = pneg %p137
      %p144 = scmp.eq.s32.totalorder %s18, 1
      %p145 = por %p143, %p144
      %p146 = scmp.ne.s32.totalorder %s138, %s141
      %p147 = scmp.eq.s32.totalorder %s18, 0
      %p148 = por %p146, %p147
      %p149 = scmp.ne.s32.totalorder %s138, %s141
      %p150 = scmp.eq.s32.totalorder %s23, 1
      %p151 = por %p149, %p150
      %p152 = scmp.ne.s32.totalorder %s141, %s142
      %p153 = scmp.eq.s32.totalorder %s23, 0
      %p154 = por %p152, %p153
      %p155 = scmp.ne.s32.totalorder %s141, %s142
      %p156 = scmp.eq.s32.totalorder %s24, 1
      %p157 = por %p155, %p156
      %p159 = scmp.ne.s32.totalorder %s142, %s158
      %p160 = scmp.eq.s32.totalorder %s24, 0
      %p161 = por %p159, %p160
      %p162 = scmp.le.s32.totalorder 1, %s18
      %p163 = scmp.lt.s32.totalorder %s18, 3
      %p164 = pnand %p162, %p163
      %p165 = pneg %p164
      // Predicated region
      $region9: #{tpu_custom_call.1} parent=5 // pred_check
        _
      $region10: #{tpu_custom_call.1} parent=5 // pred_check_branch
        %167 = sbr.rel (%p164) target = $region12
      $region11: #{tpu_custom_call.1} parent=5 // pred_region
        %s168 = ssub.s32 %s18, 1
        // Predicated region
        $region13: #{tpu_custom_call.1} parent=11 // pred_check
          %p169 = pneg %p65
        $region14: #{tpu_custom_call.1} parent=11 // pred_check_branch
          %171 = sbr.rel (%p169) target = $region16
        $region15: #{tpu_custom_call.1} parent=11 // pred_region
          %s173 = ssub.s32 512, 512
          %174 = vsyncadd [#allocation8], %s173
          %s175 = sshll.u32 [#allocation7], 4
          %s176 = int_to_ptr.vmem [resolvable:$true] %s175
          %181 = dma.hbm_to_vmem [thread:$0]  %s1, 512, %s176, [#allocation8], 128, 128, 8
        $region16: #{tpu_custom_call.1} parent=11 // pred_fallthru
          _
        // Predicated region
        $region17: #{tpu_custom_call.1} parent=11 // pred_check
          %p182 = pneg %p86
        $region18: #{tpu_custom_call.1} parent=11 // pred_check_branch
          %184 = sbr.rel (%p182) target = $region20
        $region19: #{tpu_custom_call.1} parent=11 // pred_region
          _
        $region20: #{tpu_custom_call.1} parent=11 // pred_fallthru
          _
        // Predicated region
        $region21: #{tpu_custom_call.1} parent=11 // pred_check
          %p185 = pneg %p107
        $region22: #{tpu_custom_call.1} parent=11 // pred_check_branch
          %187 = sbr.rel (%p185) target = $region24
        $region23: #{tpu_custom_call.1} parent=11 // pred_region
          %s189 = ssub.s32 512, 512
          %190 = vsyncadd [#allocation8], %s189
          %s191 = sshll.u32 [#allocation9], 4
          %s192 = int_to_ptr.vmem [resolvable:$true] %s191
          %197 = dma.hbm_to_vmem [thread:$0]  %s3, 512, %s192, [#allocation8], 128, 128, 8
        $region24: #{tpu_custom_call.1} parent=11 // pred_fallthru
          _
        // Predicated region
        $region25: #{tpu_custom_call.1} parent=11 // pred_check
          %p198 = pneg %p128
        $region26: #{tpu_custom_call.1} parent=11 // pred_check_branch
          %200 = sbr.rel (%p198) target = $region28
        $region27: #{tpu_custom_call.1} parent=11 // pred_region
          _
        $region28: #{tpu_custom_call.1} parent=11 // pred_fallthru
          _
      $region12: #{tpu_custom_call.1} parent=5 // pred_fallthru
        _
      %p201 = scmp.lt.s32.totalorder %s18, 2
      // Predicated region
      $region29: #{tpu_custom_call.1} parent=5 // pred_check
        %p202 = pneg %p201
      $region30: #{tpu_custom_call.1} parent=5 // pred_check_branch
        %204 = sbr.rel (%p202) target = $region32
      $region31: #{tpu_custom_call.1} parent=5 // pred_region
        // Predicated region
        $region33: #{tpu_custom_call.1} parent=31 // pred_check
          %p205 = pneg %p38
        $region34: #{tpu_custom_call.1} parent=31 // pred_check_branch
          %207 = sbr.rel (%p205) target = $region36
        $region35: #{tpu_custom_call.1} parent=31 // pred_region
          %s208 = sand.u32 %s28, 1
          %s209 = scalar_lea.sflag [#allocation5], %s208
          %s210 = sand.u32 %s28, 1
          %s211 = smul.addr %s210, 32
          %s212 = scalar_lea.vmem [#allocation4], %s211
          %s213 = smul.u32 4, %s18
          %s215 = ssub.s32 512, 512
          %216 = vsyncadd %s209, %s215
          %s217 = smul.addr %s213, 128
          %s218 = scalar_lea.hbm %s0, %s217
          %s219 = sshll.u32 %s212, 4
          %s220 = int_to_ptr.vmem [resolvable:$true] %s219
          %225 = dma.hbm_to_vmem [thread:$0]  %s218, 512, %s220, %s209, 128, 128, 8
        $region36: #{tpu_custom_call.1} parent=31 // pred_fallthru
          _
      $region32: #{tpu_custom_call.1} parent=5 // pred_fallthru
        _
      %p226 = scmp.le.s32.totalorder 1, %s18
      %p227 = scmp.lt.s32.totalorder %s18, 3
      %p228 = pnand %p226, %p227
      %p229 = pneg %p228
      // Predicated region
      $region37: #{tpu_custom_call.1} parent=5 // pred_check
        _
      $region38: #{tpu_custom_call.1} parent=5 // pred_check_branch
        %231 = sbr.rel (%p228) target = $region40
      $region39: #{tpu_custom_call.1} parent=5 // pred_region
        %s232 = ssub.s32 %s18, 1
        %s233 = sand.u32 %s31, 1
        %s234 = scalar_lea.sflag [#allocation5], %s233
        %s235 = sand.u32 %s31, 1
        %s236 = smul.addr %s235, 32
        %s237 = scalar_lea.vmem [#allocation4], %s236
        // Predicated region
        $region41: #{tpu_custom_call.1} parent=39 // pred_check
          %p238 = pneg %p44
        $region42: #{tpu_custom_call.1} parent=39 // pred_check_branch
          %240 = sbr.rel (%p238) target = $region44
        $region43: #{tpu_custom_call.1} parent=39 // pred_region
          %241 = dma.done %s234, 512
        $region44: #{tpu_custom_call.1} parent=39 // pred_fallthru
          _
        // Predicated region
        $region45: #{tpu_custom_call.1} parent=39 // pred_check
          %p242 = pneg %p65
        $region46: #{tpu_custom_call.1} parent=39 // pred_check_branch
          %244 = sbr.rel (%p242) target = $region48
        $region47: #{tpu_custom_call.1} parent=39 // pred_region
          %245 = dma.done [#allocation8], 512
        $region48: #{tpu_custom_call.1} parent=39 // pred_fallthru
          _
        // Predicated region
        $region49: #{tpu_custom_call.1} parent=39 // pred_check
          %p246 = pneg %p107
        $region50: #{tpu_custom_call.1} parent=39 // pred_check_branch
          %248 = sbr.rel (%p246) target = $region52
        $region51: #{tpu_custom_call.1} parent=39 // pred_region
          %249 = dma.done [#allocation8], 512
        $region52: #{tpu_custom_call.1} parent=39 // pred_fallthru
          _
        %s250 = sand.u32 %s31, 1
        %s251 = scalar_lea.sflag [#allocation5], %s250
        %s252 = sand.u32 %s31, 1
        %s253 = smul.addr %s252, 32
        %s254 = scalar_lea.vmem [#allocation4], %s253
        %p255 = pneg %p44
        %p256 = pneg %p41
        %p257 = pneg %p65
        %p258 = pneg %p62
        %p259 = pneg %p86
        %p260 = pneg %p83
        %p261 = pneg %p107
        %p262 = pneg %p104
        %p263 = pneg %p128
        %p264 = pneg %p125
        %p265 = pneg %p154
        %p266 = pneg %p151
        %s267 = sand.u32 %s141, 1
        %s268 = scalar_lea.sflag [#allocation6], %s267
        %s269 = sand.u32 %s141, 1
        %s270 = smul.addr %s269, 32
        %s271 = scalar_lea.vmem [#allocation10], %s270
        %s272 = smul.u32 4, %s23
        %s273 = smul.u32 4, %s23
        %p274 = scmp.eq.s32.totalorder %s23, 0
        // Predicated region
        $region53: #{tpu_custom_call.1} parent=39 // pred_check
          %p275 = pneg %p274
        $region54: #{tpu_custom_call.1} parent=39 // pred_check_branch
          %277 = sbr.rel (%p275) target = $region56
        $region55: #{tpu_custom_call.1} parent=39 // pred_region
          %vm278 = vcmask 261120
          %279 = vst.msk [vmem:[#allocation2] sm:$0xff] %vm278, 0.0
        $region56: #{tpu_custom_call.1} parent=39 // pred_fallthru
          _
        %v280 = vld [vmem:[#allocation7] sm:$0xff]
        %v281 = vld [vmem:[#allocation7 + $0x8] sm:$0xff]
        %v282 = vld [vmem:[#allocation7 + $0x10] sm:$0xff]
        %v283 = vld [vmem:[#allocation7 + $0x18] sm:$0xff]
        %v284 = vld [vmem:[%s2] sm:$0x1]
        %v286 = vlaneseq
        %v287 = vshrl.u32 %v286, 7
        %v288 = vsub.s32 0, %v287
        %v289 = vrot.slane %v284, %v288
        %v290 = vld [vmem:[#allocation2] sm:$0xff]
        %v291 = vld [vmem:[%s237] sm:$0xff]
        %vm292 = vcmask 261120
        %v294 = vsel %vm292, %v290, 0
        %296 = vmatprep.subr.mxu0 0.0
        %297 = vmatpush1.msra.mxu0 %v280
        %298 = vmatprep.subr.mxu0 0.0
        %299 = vmatpush1.msra.mxu0 %v281
        %300 = vmatprep.subr.mxu0 0.0
        %301 = vmatpush1.msra.mxu0 %v282
        %302 = vmatprep.subr.mxu0 0.0
        %303 = vmatpush1.msra.mxu0 %v283
        %304 = vmatprep.subr.mxu0 0.0
        %305 = vmatpush1.msra.mxu0 0.0
        %306 = vmatprep.subr.mxu0 0.0
        %307 = vmatpush1.msra.mxu0 0.0
        %308 = vmatprep.subr.mxu0 0.0
        %309 = vmatpush1.msra.mxu0 0.0
        %310 = vmatprep.subr.mxu0 0.0
        %311 = vmatpush1.msra.mxu0 0.0
        %312 = vmatprep.subr.mxu0 0.0
        %313 = vmatpush1.msra.mxu0 0.0
        %314 = vmatprep.subr.mxu0 0.0
        %315 = vmatpush1.msra.mxu0 0.0
        %316 = vmatprep.subr.mxu0 0.0
        %317 = vmatpush1.msra.mxu0 0.0
        %318 = vmatprep.subr.mxu0 0.0
        %319 = vmatpush1.msra.mxu0 0.0
        %320 = vmatprep.subr.mxu0 0.0
        %321 = vmatpush1.msra.mxu0 0.0
        %322 = vmatprep.subr.mxu0 0.0
        %323 = vmatpush1.msra.mxu0 0.0
        %324 = vmatprep.subr.mxu0 0.0
        %325 = vmatpush1.msra.mxu0 0.0
        %326 = vmatprep.subr.mxu0 0.0
        %327 = vmatpush1.msra.mxu0 0.0
        %328 = vmatprep.subr.mxu0 0.0
        %329 = vmatpush1.msra.mxu0 0.0
        %330 = vmatprep.subr.mxu0 0.0
        %331 = vmatpush1.msra.mxu0 0.0
        %332 = vmatprep.subr.mxu0 0.0
        %333 = vmatpush1.msra.mxu0 0.0
        %334 = vmatprep.subr.mxu0 0.0
        %335 = vmatpush1.msra.mxu0 0.0
        %336 = vmatprep.subr.mxu0 0.0
        %337 = vmatpush1.msra.mxu0 0.0
        %338 = vmatprep.subr.mxu0 0.0
        %339 = vmatpush1.msra.mxu0 0.0
        %340 = vmatprep.subr.mxu0 0.0
        %341 = vmatpush1.msra.mxu0 0.0
        %342 = vmatprep.subr.mxu0 0.0
        %343 = vmatpush1.msra.mxu0 0.0
        %344 = vmatprep.subr.mxu0 0.0
        %345 = vmatpush1.msra.mxu0 0.0
        %346 = vmatprep.subr.mxu0 0.0
        %347 = vmatpush1.msra.mxu0 0.0
        %348 = vmatprep.subr.mxu0 0.0
        %349 = vmatpush1.msra.mxu0 0.0
        %350 = vmatprep.subr.mxu0 0.0
        %351 = vmatpush1.msra.mxu0 0.0
        %352 = vmatprep.subr.mxu0 0.0
        %353 = vmatpush1.msra.mxu0 0.0
        %354 = vmatprep.subr.mxu0 0.0
        %355 = vmatpush1.msra.mxu0 0.0
        %356 = vmatprep.subr.mxu0 0.0
        %357 = vmatpush1.msra.mxu0 0.0
        %358 = vmatprep.subr.mxu0 0.0
        %359 = vmatpush1.msra.mxu0 0.0
        %360 = vmatprep.mubr.f32.mxu0 0.0
        %361 = vmatmul.mubr.f32.gmra.mrb[0].mxu0 %v294
        %v362 = vpop.f32.mrb[0].mxu0
        %v363 = vadd.f32 0.0, %v362
        %v364 = vpop.f32.mrb[0].mxu0
        %365 = vdwg.mxu0
        %v366 = vadd.f32 %v291, %v363
        %v367 = vxor.u32 %v366, 2147483648
        %v368 = vmul.f32 %v367, 1.442695
        %v369 = vpow.pop %v368
        %v370 = vadd.f32 %v369, 1.0
        %v371 = vrcp.pop %v370
        %v372 = vmul.f32 1.0, %v371
        %373 = vrot.lane.b32.xlu0 %v289, 64
        %v374 = vpop.permute.xlu0 %373
        %v376 = vadd.f32 %v363, %v374
        %378 = vrot.lane.b32.xlu0 %v376, 64
        %v379 = vpop.permute.xlu0 %378
        %v381 = vmul.f32 %v372, %v379
        %383 = vrot.lane.b32.xlu0 %v381, 64
        %v384 = vpop.permute.xlu0 %383
        %v386 = vadd.f32 %v291, %v384
        %v387 = vtanh.pop %v386
        %v388 = vsub.f32 1.0, %v372
        %390 = vrot.lane.b32.xlu0 %v387, 96
        %v391 = vpop.permute.xlu0 %390
        %v393 = vmul.f32 %v388, %v391
        %394 = vrot.lane.b32.xlu0 %v290, 32
        %v395 = vpop.permute.xlu0 %394
        %v397 = vmul.f32 %v372, %v395
        %v398 = vadd.f32 %v393, %v397
        %400 = vrot.lane.b32.xlu0 %v398, 96
        %v401 = vpop.permute.xlu0 %400
        %403 = vst.msk [vmem:[#allocation3] sm:$0xff] %vm292, %v401
        %s404 = scalar_lea.vmem %s237, 8 [#allocation4]
        %v405 = vld [vmem:[%s404] sm:$0xff]
        %v406 = vsel %vm292, %v401, 0
        %408 = vmatprep.subr.mxu0 0.0
        %409 = vmatpush1.msra.mxu0 %v280
        %410 = vmatprep.subr.mxu0 0.0
        %411 = vmatpush1.msra.mxu0 %v281
        %412 = vmatprep.subr.mxu0 0.0
        %413 = vmatpush1.msra.mxu0 %v282
        %414 = vmatprep.subr.mxu0 0.0
        %415 = vmatpush1.msra.mxu0 %v283
        %416 = vmatprep.subr.mxu0 0.0
        %417 = vmatpush1.msra.mxu0 0.0
        %418 = vmatprep.subr.mxu0 0.0
        %419 = vmatpush1.msra.mxu0 0.0
        %420 = vmatprep.subr.mxu0 0.0
        %421 = vmatpush1.msra.mxu0 0.0
        %422 = vmatprep.subr.mxu0 0.0
        %423 = vmatpush1.msra.mxu0 0.0
        %424 = vmatprep.subr.mxu0 0.0
        %425 = vmatpush1.msra.mxu0 0.0
        %426 = vmatprep.subr.mxu0 0.0
        %427 = vmatpush1.msra.mxu0 0.0
        %428 = vmatprep.subr.mxu0 0.0
        %429 = vmatpush1.msra.mxu0 0.0
        %430 = vmatprep.subr.mxu0 0.0
        %431 = vmatpush1.msra.mxu0 0.0
        %432 = vmatprep.subr.mxu0 0.0
        %433 = vmatpush1.msra.mxu0 0.0
        %434 = vmatprep.subr.mxu0 0.0
        %435 = vmatpush1.msra.mxu0 0.0
        %436 = vmatprep.subr.mxu0 0.0
        %437 = vmatpush1.msra.mxu0 0.0
        %438 = vmatprep.subr.mxu0 0.0
        %439 = vmatpush1.msra.mxu0 0.0
        %440 = vmatprep.subr.mxu0 0.0
        %441 = vmatpush1.msra.mxu0 0.0
        %442 = vmatprep.subr.mxu0 0.0
        %443 = vmatpush1.msra.mxu0 0.0
        %444 = vmatprep.subr.mxu0 0.0
        %445 = vmatpush1.msra.mxu0 0.0
        %446 = vmatprep.subr.mxu0 0.0
        %447 = vmatpush1.msra.mxu0 0.0
        %448 = vmatprep.subr.mxu0 0.0
        %449 = vmatpush1.msra.mxu0 0.0
        %450 = vmatprep.subr.mxu0 0.0
        %451 = vmatpush1.msra.mxu0 0.0
        %452 = vmatprep.subr.mxu0 0.0
        %453 = vmatpush1.msra.mxu0 0.0
        %454 = vmatprep.subr.mxu0 0.0
        %455 = vmatpush1.msra.mxu0 0.0
        %456 = vmatprep.subr.mxu0 0.0
        %457 = vmatpush1.msra.mxu0 0.0
        %458 = vmatprep.subr.mxu0 0.0
        %459 = vmatpush1.msra.mxu0 0.0
        %460 = vmatprep.subr.mxu0 0.0
        %461 = vmatpush1.msra.mxu0 0.0
        %462 = vmatprep.subr.mxu0 0.0
        %463 = vmatpush1.msra.mxu0 0.0
        %464 = vmatprep.subr.mxu0 0.0
        %465 = vmatpush1.msra.mxu0 0.0
        %466 = vmatprep.subr.mxu0 0.0
        %467 = vmatpush1.msra.mxu0 0.0
        %468 = vmatprep.subr.mxu0 0.0
        %469 = vmatpush1.msra.mxu0 0.0
        %470 = vmatprep.subr.mxu0 0.0
        %471 = vmatpush1.msra.mxu0 0.0
        %472 = vmatprep.mubr.f32.mxu0 0.0
        %473 = vmatmul.mubr.f32.gmra.mrb[0].mxu0 %v406
        %v474 = vpop.f32.mrb[0].mxu0
        %v475 = vadd.f32 0.0, %v474
        %v476 = vpop.f32.mrb[0].mxu0
        %477 = vdwg.mxu0
        %v478 = vadd.f32 %v405, %v475
        %v479 = vxor.u32 %v478, 2147483648
        %v480 = vmul.f32 %v479, 1.442695
        %v481 = vpow.pop %v480
        %v482 = vadd.f32 %v481, 1.0
        %v483 = vrcp.pop %v482
        %v484 = vmul.f32 1.0, %v483
        %v485 = vadd.f32 %v475, %v374
        %487 = vrot.lane.b32.xlu0 %v485, 64
        %v488 = vpop.permute.xlu0 %487
        %v490 = vmul.f32 %v484, %v488
        %492 = vrot.lane.b32.xlu0 %v490, 64
        %v493 = vpop.permute.xlu0 %492
        %v495 = vadd.f32 %v405, %v493
        %v496 = vtanh.pop %v495
        %v497 = vsub.f32 1.0, %v484
        %499 = vrot.lane.b32.xlu0 %v496, 96
        %v500 = vpop.permute.xlu0 %499
        %v502 = vmul.f32 %v497, %v500
        %v503 = vmul.f32 %v484, %v398
        %v504 = vadd.f32 %v502, %v503
        %506 = vrot.lane.b32.xlu0 %v504, 96
        %v507 = vpop.permute.xlu0 %506
        %s509 = scalar_lea.vmem [#allocation3], 8
        %510 = vst.msk [vmem:[%s509] sm:$0xff] %vm292, %v507
        %s511 = scalar_lea.vmem %s237, 16 [#allocation4]
        %v512 = vld [vmem:[%s511] sm:$0xff]
        %v513 = vsel %vm292, %v507, 0
        %515 = vmatprep.subr.mxu0 0.0
        %516 = vmatpush1.msra.mxu0 %v280
        %517 = vmatprep.subr.mxu0 0.0
        %518 = vmatpush1.msra.mxu0 %v281
        %519 = vmatprep.subr.mxu0 0.0
        %520 = vmatpush1.msra.mxu0 %v282
        %521 = vmatprep.subr.mxu0 0.0
        %522 = vmatpush1.msra.mxu0 %v283
        %523 = vmatprep.subr.mxu0 0.0
        %524 = vmatpush1.msra.mxu0 0.0
        %525 = vmatprep.subr.mxu0 0.0
        %526 = vmatpush1.msra.mxu0 0.0
        %527 = vmatprep.subr.mxu0 0.0
        %528 = vmatpush1.msra.mxu0 0.0
        %529 = vmatprep.subr.mxu0 0.0
        %530 = vmatpush1.msra.mxu0 0.0
        %531 = vmatprep.subr.mxu0 0.0
        %532 = vmatpush1.msra.mxu0 0.0
        %533 = vmatprep.subr.mxu0 0.0
        %534 = vmatpush1.msra.mxu0 0.0
        %535 = vmatprep.subr.mxu0 0.0
        %536 = vmatpush1.msra.mxu0 0.0
        %537 = vmatprep.subr.mxu0 0.0
        %538 = vmatpush1.msra.mxu0 0.0
        %539 = vmatprep.subr.mxu0 0.0
        %540 = vmatpush1.msra.mxu0 0.0
        %541 = vmatprep.subr.mxu0 0.0
        %542 = vmatpush1.msra.mxu0 0.0
        %543 = vmatprep.subr.mxu0 0.0
        %544 = vmatpush1.msra.mxu0 0.0
        %545 = vmatprep.subr.mxu0 0.0
        %546 = vmatpush1.msra.mxu0 0.0
        %547 = vmatprep.subr.mxu0 0.0
        %548 = vmatpush1.msra.mxu0 0.0
        %549 = vmatprep.subr.mxu0 0.0
        %550 = vmatpush1.msra.mxu0 0.0
        %551 = vmatprep.subr.mxu0 0.0
        %552 = vmatpush1.msra.mxu0 0.0
        %553 = vmatprep.subr.mxu0 0.0
        %554 = vmatpush1.msra.mxu0 0.0
        %555 = vmatprep.subr.mxu0 0.0
        %556 = vmatpush1.msra.mxu0 0.0
        %557 = vmatprep.subr.mxu0 0.0
        %558 = vmatpush1.msra.mxu0 0.0
        %559 = vmatprep.subr.mxu0 0.0
        %560 = vmatpush1.msra.mxu0 0.0
        %561 = vmatprep.subr.mxu0 0.0
        %562 = vmatpush1.msra.mxu0 0.0
        %563 = vmatprep.subr.mxu0 0.0
        %564 = vmatpush1.msra.mxu0 0.0
        %565 = vmatprep.subr.mxu0 0.0
        %566 = vmatpush1.msra.mxu0 0.0
        %567 = vmatprep.subr.mxu0 0.0
        %568 = vmatpush1.msra.mxu0 0.0
        %569 = vmatprep.subr.mxu0 0.0
        %570 = vmatpush1.msra.mxu0 0.0
        %571 = vmatprep.subr.mxu0 0.0
        %572 = vmatpush1.msra.mxu0 0.0
        %573 = vmatprep.subr.mxu0 0.0
        %574 = vmatpush1.msra.mxu0 0.0
        %575 = vmatprep.subr.mxu0 0.0
        %576 = vmatpush1.msra.mxu0 0.0
        %577 = vmatprep.subr.mxu0 0.0
        %578 = vmatpush1.msra.mxu0 0.0
        %579 = vmatprep.mubr.f32.mxu0 0.0
        %580 = vmatmul.mubr.f32.gmra.mrb[0].mxu0 %v513
        %v581 = vpop.f32.mrb[0].mxu0
        %v582 = vadd.f32 0.0, %v581
        %v583 = vpop.f32.mrb[0].mxu0
        %584 = vdwg.mxu0
        %v585 = vadd.f32 %v512, %v582
        %v586 = vxor.u32 %v585, 2147483648
        %v587 = vmul.f32 %v586, 1.442695
        %v588 = vpow.pop %v587
        %v589 = vadd.f32 %v588, 1.0
        %v590 = vrcp.pop %v589
        %v591 = vmul.f32 1.0, %v590
        %v592 = vadd.f32 %v582, %v374
        %594 = vrot.lane.b32.xlu0 %v592, 64
        %v595 = vpop.permute.xlu0 %594
        %v597 = vmul.f32 %v591, %v595
        %599 = vrot.lane.b32.xlu0 %v597, 64
        %v600 = vpop.permute.xlu0 %599
        %v602 = vadd.f32 %v512, %v600
        %v603 = vtanh.pop %v602
        %v604 = vsub.f32 1.0, %v591
        %606 = vrot.lane.b32.xlu0 %v603, 96
        %v607 = vpop.permute.xlu0 %606
        %v609 = vmul.f32 %v604, %v607
        %v610 = vmul.f32 %v591, %v504
        %v611 = vadd.f32 %v609, %v610
        %613 = vrot.lane.b32.xlu0 %v611, 96
        %v614 = vpop.permute.xlu0 %613
        %s616 = scalar_lea.vmem [#allocation3], 16
        %617 = vst.msk [vmem:[%s616] sm:$0xff] %vm292, %v614
        %s618 = scalar_lea.vmem %s237, 24 [#allocation4]
        %v619 = vld [vmem:[%s618] sm:$0xff]
        %v620 = vsel %vm292, %v614, 0
        %622 = vmatprep.subr.mxu0 0.0
        %623 = vmatpush1.msra.mxu0 %v280
        %624 = vmatprep.subr.mxu0 0.0
        %625 = vmatpush1.msra.mxu0 %v281
        %626 = vmatprep.subr.mxu0 0.0
        %627 = vmatpush1.msra.mxu0 %v282
        %628 = vmatprep.subr.mxu0 0.0
        %629 = vmatpush1.msra.mxu0 %v283
        %630 = vmatprep.subr.mxu0 0.0
        %631 = vmatpush1.msra.mxu0 0.0
        %632 = vmatprep.subr.mxu0 0.0
        %633 = vmatpush1.msra.mxu0 0.0
        %634 = vmatprep.subr.mxu0 0.0
        %635 = vmatpush1.msra.mxu0 0.0
        %636 = vmatprep.subr.mxu0 0.0
        %637 = vmatpush1.msra.mxu0 0.0
        %638 = vmatprep.subr.mxu0 0.0
        %639 = vmatpush1.msra.mxu0 0.0
        %640 = vmatprep.subr.mxu0 0.0
        %641 = vmatpush1.msra.mxu0 0.0
        %642 = vmatprep.subr.mxu0 0.0
        %643 = vmatpush1.msra.mxu0 0.0
        %644 = vmatprep.subr.mxu0 0.0
        %645 = vmatpush1.msra.mxu0 0.0
        %646 = vmatprep.subr.mxu0 0.0
        %647 = vmatpush1.msra.mxu0 0.0
        %648 = vmatprep.subr.mxu0 0.0
        %649 = vmatpush1.msra.mxu0 0.0
        %650 = vmatprep.subr.mxu0 0.0
        %651 = vmatpush1.msra.mxu0 0.0
        %652 = vmatprep.subr.mxu0 0.0
        %653 = vmatpush1.msra.mxu0 0.0
        %654 = vmatprep.subr.mxu0 0.0
        %655 = vmatpush1.msra.mxu0 0.0
        %656 = vmatprep.subr.mxu0 0.0
        %657 = vmatpush1.msra.mxu0 0.0
        %658 = vmatprep.subr.mxu0 0.0
        %659 = vmatpush1.msra.mxu0 0.0
        %660 = vmatprep.subr.mxu0 0.0
        %661 = vmatpush1.msra.mxu0 0.0
        %662 = vmatprep.subr.mxu0 0.0
        %663 = vmatpush1.msra.mxu0 0.0
        %664 = vmatprep.subr.mxu0 0.0
        %665 = vmatpush1.msra.mxu0 0.0
        %666 = vmatprep.subr.mxu0 0.0
        %667 = vmatpush1.msra.mxu0 0.0
        %668 = vmatprep.subr.mxu0 0.0
        %669 = vmatpush1.msra.mxu0 0.0
        %670 = vmatprep.subr.mxu0 0.0
        %671 = vmatpush1.msra.mxu0 0.0
        %672 = vmatprep.subr.mxu0 0.0
        %673 = vmatpush1.msra.mxu0 0.0
        %674 = vmatprep.subr.mxu0 0.0
        %675 = vmatpush1.msra.mxu0 0.0
        %676 = vmatprep.subr.mxu0 0.0
        %677 = vmatpush1.msra.mxu0 0.0
        %678 = vmatprep.subr.mxu0 0.0
        %679 = vmatpush1.msra.mxu0 0.0
        %680 = vmatprep.subr.mxu0 0.0
        %681 = vmatpush1.msra.mxu0 0.0
        %682 = vmatprep.subr.mxu0 0.0
        %683 = vmatpush1.msra.mxu0 0.0
        %684 = vmatprep.subr.mxu0 0.0
        %685 = vmatpush1.msra.mxu0 0.0
        %686 = vmatprep.mubr.f32.mxu0 0.0
        %687 = vmatmul.mubr.f32.gmra.mrb[0].mxu0 %v620
        %v688 = vpop.f32.mrb[0].mxu0
        %v689 = vadd.f32 0.0, %v688
        %v690 = vpop.f32.mrb[0].mxu0
        %691 = vdwg.mxu0
        %v692 = vadd.f32 %v619, %v689
        %v693 = vxor.u32 %v692, 2147483648
        %v694 = vmul.f32 %v693, 1.442695
        %v695 = vpow.pop %v694
        %v696 = vadd.f32 %v695, 1.0
        %v697 = vrcp.pop %v696
        %v698 = vmul.f32 1.0, %v697
        %v699 = vadd.f32 %v689, %v374
        %701 = vrot.lane.b32.xlu0 %v699, 64
        %v702 = vpop.permute.xlu0 %701
        %v704 = vmul.f32 %v698, %v702
        %706 = vrot.lane.b32.xlu0 %v704, 64
        %v707 = vpop.permute.xlu0 %706
        %v709 = vadd.f32 %v619, %v707
        %v710 = vtanh.pop %v709
        %v711 = vsub.f32 1.0, %v698
        %713 = vrot.lane.b32.xlu0 %v710, 96
        %v714 = vpop.permute.xlu0 %713
        %v716 = vmul.f32 %v711, %v714
        %v717 = vmul.f32 %v698, %v611
        %v718 = vadd.f32 %v716, %v717
        %720 = vrot.lane.b32.xlu0 %v718, 96
        %v721 = vpop.permute.xlu0 %720
        %s723 = scalar_lea.vmem [#allocation3], 24
        %724 = vst.msk [vmem:[%s723] sm:$0xff] %vm292, %v721
        %725 = vst.msk [vmem:[#allocation2] sm:$0xff] %vm292, %v721
        %v726 = vld [vmem:[#allocation3] sm:$0xff]
        %v727 = vld [vmem:[#allocation3 + $0x8] sm:$0xff]
        %v728 = vld [vmem:[#allocation3 + $0x10] sm:$0xff]
        %v729 = vld [vmem:[#allocation3 + $0x18] sm:$0xff]
        %v730 = vld [vmem:[#allocation9] sm:$0xff]
        %v731 = vld [vmem:[#allocation9 + $0x8] sm:$0xff]
        %v732 = vld [vmem:[#allocation9 + $0x10] sm:$0xff]
        %v733 = vld [vmem:[#allocation9 + $0x18] sm:$0xff]
        %v734 = vld [vmem:[%s4] sm:$0x1]
        %v736 = vlaneseq
        %v737 = vshrl.u32 %v736, 7
        %v738 = vsub.s32 0, %v737
        %v739 = vrot.slane %v734, %v738
        %v742 = vsel %vm292, %v726, 0
        %v745 = vsel %vm292, %v727, 0
        %v748 = vsel %vm292, %v728, 0
        %v751 = vsel %vm292, %v729, 0
        %753 = vmatprep.subr.mxu0 0.0
        %754 = vmatpush1.msra.mxu0 %v730
        %755 = vmatprep.subr.mxu0 0.0
        %756 = vmatpush1.msra.mxu0 %v731
        %757 = vmatprep.subr.mxu0 0.0
        %758 = vmatpush1.msra.mxu0 %v732
        %759 = vmatprep.subr.mxu0 0.0
        %760 = vmatpush1.msra.mxu0 %v733
        %761 = vmatprep.subr.mxu0 0.0
        %762 = vmatpush1.msra.mxu0 0.0
        %763 = vmatprep.subr.mxu0 0.0
        %764 = vmatpush1.msra.mxu0 0.0
        %765 = vmatprep.subr.mxu0 0.0
        %766 = vmatpush1.msra.mxu0 0.0
        %767 = vmatprep.subr.mxu0 0.0
        %768 = vmatpush1.msra.mxu0 0.0
        %769 = vmatprep.subr.mxu0 0.0
        %770 = vmatpush1.msra.mxu0 0.0
        %771 = vmatprep.subr.mxu0 0.0
        %772 = vmatpush1.msra.mxu0 0.0
        %773 = vmatprep.subr.mxu0 0.0
        %774 = vmatpush1.msra.mxu0 0.0
        %775 = vmatprep.subr.mxu0 0.0
        %776 = vmatpush1.msra.mxu0 0.0
        %777 = vmatprep.subr.mxu0 0.0
        %778 = vmatpush1.msra.mxu0 0.0
        %779 = vmatprep.subr.mxu0 0.0
        %780 = vmatpush1.msra.mxu0 0.0
        %781 = vmatprep.subr.mxu0 0.0
        %782 = vmatpush1.msra.mxu0 0.0
        %783 = vmatprep.subr.mxu0 0.0
        %784 = vmatpush1.msra.mxu0 0.0
        %785 = vmatprep.subr.mxu0 0.0
        %786 = vmatpush1.msra.mxu0 0.0
        %787 = vmatprep.subr.mxu0 0.0
        %788 = vmatpush1.msra.mxu0 0.0
        %789 = vmatprep.subr.mxu0 0.0
        %790 = vmatpush1.msra.mxu0 0.0
        %791 = vmatprep.subr.mxu0 0.0
        %792 = vmatpush1.msra.mxu0 0.0
        %793 = vmatprep.subr.mxu0 0.0
        %794 = vmatpush1.msra.mxu0 0.0
        %795 = vmatprep.subr.mxu0 0.0
        %796 = vmatpush1.msra.mxu0 0.0
        %797 = vmatprep.subr.mxu0 0.0
        %798 = vmatpush1.msra.mxu0 0.0
        %799 = vmatprep.subr.mxu0 0.0
        %800 = vmatpush1.msra.mxu0 0.0
        %801 = vmatprep.subr.mxu0 0.0
        %802 = vmatpush1.msra.mxu0 0.0
        %803 = vmatprep.subr.mxu0 0.0
        %804 = vmatpush1.msra.mxu0 0.0
        %805 = vmatprep.subr.mxu0 0.0
        %806 = vmatpush1.msra.mxu0 0.0
        %807 = vmatprep.subr.mxu0 0.0
        %808 = vmatpush1.msra.mxu0 0.0
        %809 = vmatprep.subr.mxu0 0.0
        %810 = vmatpush1.msra.mxu0 0.0
        %811 = vmatprep.subr.mxu0 0.0
        %812 = vmatpush1.msra.mxu0 0.0
        %813 = vmatprep.subr.mxu0 0.0
        %814 = vmatpush1.msra.mxu0 0.0
        %815 = vmatprep.subr.mxu0 0.0
        %816 = vmatpush1.msra.mxu0 0.0
        %817 = vmatprep.mubr.f32.mxu0 0.0
        %818 = vmatmul.mubr.f32.gmra.mrb[0].mxu0 %v742
        %v819 = vpop.f32.mrb[0].mxu0
        %v820 = vadd.f32 %v739, %v819
        %v821 = vpop.f32.mrb[0].mxu0
        %822 = vmatprep.mubr.f32.mxu0 0.0
        %823 = vmatmul.mubr.f32.gmra.mrb[0].mxu0 %v745
        %v824 = vpop.f32.mrb[0].mxu0
        %v825 = vadd.f32 %v739, %v824
        %v826 = vpop.f32.mrb[0].mxu0
        %827 = vmatprep.mubr.f32.mxu0 0.0
        %828 = vmatmul.mubr.f32.gmra.mrb[0].mxu0 %v748
        %v829 = vpop.f32.mrb[0].mxu0
        %v830 = vadd.f32 %v739, %v829
        %v831 = vpop.f32.mrb[0].mxu0
        %832 = vmatprep.mubr.f32.mxu0 0.0
        %833 = vmatmul.mubr.f32.gmra.mrb[0].mxu0 %v751
        %v834 = vpop.f32.mrb[0].mxu0
        %v835 = vadd.f32 %v739, %v834
        %v836 = vpop.f32.mrb[0].mxu0
        %837 = vdwg.mxu0
        %838 = vst [vmem:[%s271] sm:$0xff] %v820
        %839 = vst [vmem:[%s271 + $0x8] sm:$0xff] %v825
        %840 = vst [vmem:[%s271 + $0x10] sm:$0xff] %v830
        %841 = vst [vmem:[%s271 + $0x18] sm:$0xff] %v835
        %s842 = sand.u32 %s141, 1
        %s843 = scalar_lea.sflag [#allocation6], %s842
        %s844 = sand.u32 %s141, 1
        %s845 = smul.addr %s844, 32
        %s846 = scalar_lea.vmem [#allocation10], %s845
        // Predicated region
        $region57: #{tpu_custom_call.1} parent=39 // pred_check
          %p847 = pneg %p151
        $region58: #{tpu_custom_call.1} parent=39 // pred_check_branch
          %849 = sbr.rel (%p847) target = $region60
        $region59: #{tpu_custom_call.1} parent=39 // pred_region
          %s850 = smul.u32 4, %s23
          %s852 = ssub.s32 512, 512
          %853 = vsyncadd %s843, %s852
          %s854 = smul.addr %s850, 128
          %s855 = scalar_lea.hbm %s5, %s854
          %s856 = sshll.u32 %s846, 4
          %s857 = int_to_ptr.vmem [resolvable:$true] %s856
          %862 = dma.vmem_to_hbm [thread:$0]  %s857, 512, %s855, %s843, 128, 128, 8
        $region60: #{tpu_custom_call.1} parent=39 // pred_fallthru
          _
      $region40: #{tpu_custom_call.1} parent=5 // pred_fallthru
        _
      %p863 = scmp.le.s32.totalorder 2, %s18
      // Predicated region
      $region61: #{tpu_custom_call.1} parent=5 // pred_check
        %p864 = pneg %p863
      $region62: #{tpu_custom_call.1} parent=5 // pred_check_branch
        %866 = sbr.rel (%p864) target = $region64
      $region63: #{tpu_custom_call.1} parent=5 // pred_region
        %s867 = ssub.s32 %s18, 2
        // Predicated region
        $region65: #{tpu_custom_call.1} parent=63 // pred_check
          %p868 = pneg %p157
        $region66: #{tpu_custom_call.1} parent=63 // pred_check_branch
          %870 = sbr.rel (%p868) target = $region68
        $region67: #{tpu_custom_call.1} parent=63 // pred_region
          %s871 = sand.u32 %s142, 1
          %s872 = scalar_lea.sflag [#allocation6], %s871
          %s873 = sand.u32 %s142, 1
          %s874 = smul.addr %s873, 32
          %s875 = scalar_lea.vmem [#allocation10], %s874
          %876 = dma.done %s872, 512
        $region68: #{tpu_custom_call.1} parent=63 // pred_fallthru
          _
      $region64: #{tpu_custom_call.1} parent=5 // pred_fallthru
        _
    $region6: #{tpu_custom_call.1} parent=1 // loop_footer
      %s22 = sadd.s32 1, %s18
    $region7: #{tpu_custom_call.1} parent=1 // loop_footer_branch
      %17 = sbr.rel target = $region3
    $region8: #{tpu_custom_call.1} parent=1 // loop_exit
      _
    %877 = vsyncpa [#allocation5], 1
    %s878 = scalar_lea.sflag [#allocation5], 1
    %879 = vsyncpa %s878, 1
    %880 = vsyncpa [#allocation8], 1
    %881 = vsyncpa [#allocation6], 1
    %s882 = scalar_lea.sflag [#allocation6], 1
    %883 = vsyncpa %s882, 1

</llo_original>
